<compile_context>
chip_gen: v5e
topology: v5e:2x2
jax: 0.10.0
libtpu: 0.0.40
codegen_flags: <defaults>
</compile_context>

<pallas_src>
import math

import numpy as np
import jax
import jax.numpy as jnp
from jax import lax
from jax.experimental import pallas as pl
from jax.experimental.pallas import tpu as pltpu

# ----- model hyper-parameters (small, consistent with the module) -----
BATCH = 2
SEQ = 8
HID_DIM = 32
N_HEADS = 4
HEAD_DIM = HID_DIM // N_HEADS
PF_DIM = 64
EPS = 1e-5

BS = BATCH * SEQ                  # 16 token rows
R = N_HEADS * BS                  # 64 stacked (head, token) columns
SLAB_LANES = 3 * HID_DIM          # 96 lanes

# --- row layout of the packed parameter/constant slab (all offsets % 8 == 0) ---
ROW_WQKV = 0                          # (HID_DIM, 3*HID_DIM)
ROW_WO = ROW_WQKV + HID_DIM           # (HID_DIM, HID_DIM)
ROW_W1 = ROW_WO + HID_DIM             # (HID_DIM, PF_DIM)
ROW_W2 = ROW_W1 + HID_DIM             # (PF_DIM, HID_DIM)
ROW_VEC = ROW_W2 + PF_DIM             # 8 rows of packed bias / LayerNorm vectors
ROW_HMASK = ROW_VEC + 8               # (R, HID_DIM)  head mask
ROW_ABIAS = ROW_HMASK + R             # (BS, R)       additive cross-batch mask
ROW_BONES = ROW_ABIAS + BS            # (R, R)        per-head block-ones
SLAB_ROWS = ROW_BONES + R             # 312


def _layernorm(x, g, b):
    mu = jnp.mean(x, axis=-1, keepdims=True)
    var = jnp.mean((x - mu) ** 2, axis=-1, keepdims=True)
    return (x - mu) * lax.rsqrt(var + EPS) * g + b


def encoder_layer_kernel(x_ref, slab_ref, out_ref):
    # Single invocation (no grid): the whole (B*S, H) = (16, 32) problem plus
    # the ~117 KiB parameter slab is resident in VMEM; only 3 DMAs total.
    x = x_ref[...]                                                      # (16, 32)

    # ---- unpack the slab (static row-block loads + lane-prefix value slices) ----
    w_qkv = slab_ref[ROW_WQKV:ROW_WQKV + HID_DIM, :]                    # (32, 96)
    w_o = slab_ref[ROW_WO:ROW_WO + HID_DIM, :][:, :HID_DIM]             # (32, 32)
    w_1 = slab_ref[ROW_W1:ROW_W1 + HID_DIM, :][:, :PF_DIM]              # (32, 64)
    w_2 = slab_ref[ROW_W2:ROW_W2 + PF_DIM, :][:, :HID_DIM]              # (64, 32)

    V = slab_ref[ROW_VEC:ROW_VEC + 8, :]                                # (8, 96)
    b_qkv = V[0:1, :]                                                   # (1, 96)
    b_o = V[1:2, :HID_DIM]
    b_1 = V[2:3, :PF_DIM]
    b_2 = V[3:4, :HID_DIM]
    g1 = V[4:5, :HID_DIM]
    be1 = V[5:6, :HID_DIM]
    g2 = V[6:7, :HID_DIM]
    be2 = V[7:8, :HID_DIM]

    head_mask = slab_ref[ROW_HMASK:ROW_HMASK + R, :][:, :HID_DIM]       # (64, 32)
    attn_bias = slab_ref[ROW_ABIAS:ROW_ABIAS + BS, :][:, :R]            # (16, 64)
    block_ones = slab_ref[ROW_BONES:ROW_BONES + R, :][:, :R]            # (64, 64)

    # ---- fused QKV projection (1/sqrt(head_dim) already folded into Wq/bq) ----
    qkv = jnp.dot(x, w_qkv, preferred_element_type=jnp.float32) + b_qkv
    q = qkv[:, 0:HID_DIM]
    k = qkv[:, HID_DIM:2 * HID_DIM]
    v = qkv[:, 2 * HID_DIM:3 * HID_DIM]

    # ---- multi-head attention, lane-resident (no per-head stack/unstack) ----
    # k_stack[c, d] = k[c % BS, d] * [head(c) == head(d)],  c = head*BS + token.
    k_stack = jnp.concatenate([k] * N_HEADS, axis=0) * head_mask        # (64, 32)
    v_stack = jnp.concatenate([v] * N_HEADS, axis=0) * head_mask        # (64, 32)

    # energy[i, h*BS + j] = <q_h[i], k_h[j]> (already scaled); cross-batch
    # pairs receive the precomputed -1e30 additive bias from the slab.
    energy = lax.dot_general(q, k_stack, (((1,), (1,)), ((), ())),
                             preferred_element_type=jnp.float32) + attn_bias

    # Numerically-stable softmax.  The shift is the shared row max (valid for
    # any per-row constant); per-(row, head) normalization is recovered with
    # one extra MXU matmul against the precomputed block-ones matrix.
    p = jnp.exp(energy - jnp.max(energy, axis=-1, keepdims=True))
    denom = jnp.dot(p, block_ones, preferred_element_type=jnp.float32)  # (16, 64)
    attn = p * pl.reciprocal(denom, approx=False)

    # The masked value matmul drops every head straight back into its lanes.
    attn_out = jnp.dot(attn, v_stack, preferred_element_type=jnp.float32)  # (16, 32)
    attn_proj = jnp.dot(attn_out, w_o, preferred_element_type=jnp.float32) + b_o

    # ---- residual + layernorm 1 ----
    y = _layernorm(x + attn_proj, g1, be1)

    # ---- positionwise feed-forward ----
    hdn = jnp.maximum(
        jnp.dot(y, w_1, preferred_element_type=jnp.float32) + b_1, 0.0)
    ff = jnp.dot(hdn, w_2, preferred_element_type=jnp.float32) + b_2

    # ---- residual + layernorm 2 ----
    out_ref[...] = _layernorm(y + ff, g2, be2).astype(out_ref.dtype)


def pack_encoder_params(params):
    """Pack all weights, biases, LN params and the static attention constants
    into one zero-padded f32 slab.  Done once at init (host-side numpy),
    never inside the per-call jit path."""
    (wq, bq, wk, bk, wv, bv, wo, bo, g1, be1, w1, b1, w2, b2, g2, be2) = [
        np.asarray(p, np.float32) for p in params]

    scale = np.float32(1.0 / math.sqrt(HEAD_DIM))   # fold attn scale into Wq/bq
    wq = wq * scale
    bq = bq * scale

    slab = np.zeros((SLAB_ROWS, SLAB_LANES), np.float32)
    slab[ROW_WQKV:ROW_WQKV + HID_DIM, :] = np.concatenate([wq, wk, wv], axis=1)
    slab[ROW_WO:ROW_WO + HID_DIM, :HID_DIM] = wo
    slab[ROW_W1:ROW_W1 + HID_DIM, :PF_DIM] = w1
    slab[ROW_W2:ROW_W2 + PF_DIM, :HID_DIM] = w2

    slab[ROW_VEC + 0, :3 * HID_DIM] = np.concatenate([bq, bk, bv], axis=1)[0]
    slab[ROW_VEC + 1, :HID_DIM] = bo[0]
    slab[ROW_VEC + 2, :PF_DIM] = b1[0]
    slab[ROW_VEC + 3, :HID_DIM] = b2[0]
    slab[ROW_VEC + 4, :HID_DIM] = g1[0]
    slab[ROW_VEC + 5, :HID_DIM] = be1[0]
    slab[ROW_VEC + 6, :HID_DIM] = g2[0]
    slab[ROW_VEC + 7, :HID_DIM] = be2[0]

    # head_mask[c, d] = 1 iff stacked column c and hidden lane d share a head.
    c = np.arange(R)
    d = np.arange(HID_DIM)
    slab[ROW_HMASK:ROW_HMASK + R, :HID_DIM] = (
        (c[:, None] // BS) == (d[None, :] // HEAD_DIM)).astype(np.float32)

    # Additive mask: tokens may only attend within their own batch element.
    i = np.arange(BS)
    slab[ROW_ABIAS:ROW_ABIAS + BS, :R] = np.where(
        (i[:, None] // SEQ) == ((c[None, :] % BS) // SEQ), 0.0, -1e30
    ).astype(np.float32)

    # Block-ones matrix: sums the softmax numerators within each head block.
    slab[ROW_BONES:ROW_BONES + R, :R] = (
        (c[:, None] // BS) == (c[None, :] // BS)).astype(np.float32)

    return jnp.asarray(slab)


@jax.jit
def transformer_encoder_layer(src, src_mask, slab):
    """Encoder-layer forward.  src_mask is accepted for API parity but unused:
    the reference forward never passes a mask to self_attention."""
    del src_mask
    b, s, h = src.shape
    assert b * s == BS and h == HID_DIM
    out2d = pl.pallas_call(
        encoder_layer_kernel,
        out_shape=jax.ShapeDtypeStruct((b * s, h), src.dtype),
        in_specs=[pl.BlockSpec(memory_space=pltpu.MemorySpace.VMEM),
                  pl.BlockSpec(memory_space=pltpu.MemorySpace.VMEM)],
        out_specs=pl.BlockSpec(memory_space=pltpu.MemorySpace.VMEM),
    )(src.reshape(b * s, h), slab)
    return out2d.reshape(b, s, h)


def init_params(key):
    ks = jax.random.split(key, 8)

    def lin(k, fan_in, fan_out):
        w = jax.random.normal(k, (fan_in, fan_out), jnp.float32) * 0.05
        b = jnp.zeros((1, fan_out), jnp.float32)
        return w, b

    wq, bq = lin(ks[0], HID_DIM, HID_DIM)
    wk, bk = lin(ks[1], HID_DIM, HID_DIM)
    wv, bv = lin(ks[2], HID_DIM, HID_DIM)
    wo, bo = lin(ks[3], HID_DIM, HID_DIM)
    g1 = jnp.ones((1, HID_DIM), jnp.float32)
    be1 = jnp.zeros((1, HID_DIM), jnp.float32)
    w1, b1 = lin(ks[4], HID_DIM, PF_DIM)
    w2, b2 = lin(ks[5], PF_DIM, HID_DIM)
    g2 = jnp.ones((1, HID_DIM), jnp.float32)
    be2 = jnp.zeros((1, HID_DIM), jnp.float32)
    return (wq, bq, wk, bk, wv, bv, wo, bo, g1, be1, w1, b1, w2, b2, g2, be2)


def reference_jax(src, params):
    (wq, bq, wk, bk, wv, bv, wo, bo, g1, be1, w1, b1, w2, b2, g2, be2) = params

    def ln(x, g, b):
        mu = jnp.mean(x, -1, keepdims=True)
        var = jnp.mean((x - mu) ** 2, -1, keepdims=True)
        return (x - mu) * lax.rsqrt(var + EPS) * g + b

    B, S, H = src.shape
    q = src @ wq + bq
    k = src @ wk + bk
    v = src @ wv + bv
    q = q.reshape(B, S, N_HEADS, HEAD_DIM).transpose(0, 2, 1, 3)
    k = k.reshape(B, S, N_HEADS, HEAD_DIM).transpose(0, 2, 1, 3)
    v = v.reshape(B, S, N_HEADS, HEAD_DIM).transpose(0, 2, 1, 3)
    energy = jnp.einsum("bhqd,bhkd->bhqk", q, k) / jnp.sqrt(jnp.float32(HEAD_DIM))
    attn = jax.nn.softmax(energy, axis=-1)
    o = jnp.einsum("bhqk,bhkd->bhqd", attn, v).transpose(0, 2, 1, 3).reshape(B, S, H)
    o = o @ wo + bo
    y = ln(src + o, g1, be1)
    f = jnp.maximum(y @ w1 + b1, 0.0) @ w2 + b2
    return ln(y + f, g2, be2)


if __name__ == "__main__":
    key = jax.random.PRNGKey(0)
    k_src, k_par = jax.random.split(key)
    src = jax.random.normal(k_src, (BATCH, SEQ, HID_DIM), jnp.float32)
    src_mask = jnp.ones((BATCH, 1, 1, SEQ), jnp.float32)  # unused (matches ref)
    params = init_params(k_par)

    # Pack weights + static attention constants ONCE (not in the per-call path).
    slab = pack_encoder_params(params)

    out = transformer_encoder_layer(src, src_mask, slab)
    out = jax.block_until_ready(out)

    ref = reference_jax(src, params)
    assert out.shape == (BATCH, SEQ, HID_DIM)
    max_err = float(jnp.max(jnp.abs(out - ref)))
    # Tolerance covers MXU f32 matmul pass differences vs XLA's einsum path.
    assert jnp.allclose(out, ref, atol=1e-3, rtol=1e-3), f"max_err={max_err}"
    print("KERNEL_OK")
</pallas_src>

<mosaic_0001>
module attributes {stable_mosaic.version = 11 : i64} {
  func.func @encoder_layer_kernel(%arg0: memref<16x32xf32, #tpu.memory_space<vmem>>, %arg1: memref<312x96xf32, #tpu.memory_space<vmem>>, %arg2: memref<16x32xf32, #tpu.memory_space<vmem>>) attributes {dimension_semantics = [], scalar_prefetch = 0 : i64, scratch_operands = 0 : i64, tpu.core_type = #tpu.core_type<tc>} {
    %c0 = arith.constant 0 : index
    %c0_0 = arith.constant 0 : index
    %0 = vector.load %arg0[%c0, %c0_0] : memref<16x32xf32, #tpu.memory_space<vmem>>, vector<16x32xf32>
    %c0_1 = arith.constant 0 : index
    %c0_2 = arith.constant 0 : index
    %1 = vector.load %arg1[%c0_1, %c0_2] : memref<312x96xf32, #tpu.memory_space<vmem>>, vector<32x96xf32>
    %c32 = arith.constant 32 : index
    %c0_3 = arith.constant 0 : index
    %2 = vector.load %arg1[%c32, %c0_3] : memref<312x96xf32, #tpu.memory_space<vmem>>, vector<32x96xf32>
    %3 = vector.extract_strided_slice %2 {offsets = [0, 0], sizes = [32, 32], strides = [1, 1]} : vector<32x96xf32> to vector<32x32xf32>
    %c64 = arith.constant 64 : index
    %c0_4 = arith.constant 0 : index
    %4 = vector.load %arg1[%c64, %c0_4] : memref<312x96xf32, #tpu.memory_space<vmem>>, vector<32x96xf32>
    %5 = vector.extract_strided_slice %4 {offsets = [0, 0], sizes = [32, 64], strides = [1, 1]} : vector<32x96xf32> to vector<32x64xf32>
    %c96 = arith.constant 96 : index
    %c0_5 = arith.constant 0 : index
    %6 = vector.load %arg1[%c96, %c0_5] : memref<312x96xf32, #tpu.memory_space<vmem>>, vector<64x96xf32>
    %7 = vector.extract_strided_slice %6 {offsets = [0, 0], sizes = [64, 32], strides = [1, 1]} : vector<64x96xf32> to vector<64x32xf32>
    %c160 = arith.constant 160 : index
    %c0_6 = arith.constant 0 : index
    %8 = vector.load %arg1[%c160, %c0_6] : memref<312x96xf32, #tpu.memory_space<vmem>>, vector<8x96xf32>
    %9 = vector.extract_strided_slice %8 {offsets = [0, 0], sizes = [1, 96], strides = [1, 1]} : vector<8x96xf32> to vector<1x96xf32>
    %10 = vector.extract_strided_slice %8 {offsets = [1, 0], sizes = [1, 32], strides = [1, 1]} : vector<8x96xf32> to vector<1x32xf32>
    %11 = vector.extract_strided_slice %8 {offsets = [2, 0], sizes = [1, 64], strides = [1, 1]} : vector<8x96xf32> to vector<1x64xf32>
    %12 = vector.extract_strided_slice %8 {offsets = [3, 0], sizes = [1, 32], strides = [1, 1]} : vector<8x96xf32> to vector<1x32xf32>
    %13 = vector.extract_strided_slice %8 {offsets = [4, 0], sizes = [1, 32], strides = [1, 1]} : vector<8x96xf32> to vector<1x32xf32>
    %14 = vector.extract_strided_slice %8 {offsets = [5, 0], sizes = [1, 32], strides = [1, 1]} : vector<8x96xf32> to vector<1x32xf32>
    %15 = vector.extract_strided_slice %8 {offsets = [6, 0], sizes = [1, 32], strides = [1, 1]} : vector<8x96xf32> to vector<1x32xf32>
    %16 = vector.extract_strided_slice %8 {offsets = [7, 0], sizes = [1, 32], strides = [1, 1]} : vector<8x96xf32> to vector<1x32xf32>
    %c168 = arith.constant 168 : index
    %c0_7 = arith.constant 0 : index
    %17 = vector.load %arg1[%c168, %c0_7] : memref<312x96xf32, #tpu.memory_space<vmem>>, vector<64x96xf32>
    %18 = vector.extract_strided_slice %17 {offsets = [0, 0], sizes = [64, 32], strides = [1, 1]} : vector<64x96xf32> to vector<64x32xf32>
    %c232 = arith.constant 232 : index
    %c0_8 = arith.constant 0 : index
    %19 = vector.load %arg1[%c232, %c0_8] : memref<312x96xf32, #tpu.memory_space<vmem>>, vector<16x96xf32>
    %20 = vector.extract_strided_slice %19 {offsets = [0, 0], sizes = [16, 64], strides = [1, 1]} : vector<16x96xf32> to vector<16x64xf32>
    %c248 = arith.constant 248 : index
    %c0_9 = arith.constant 0 : index
    %21 = vector.load %arg1[%c248, %c0_9] : memref<312x96xf32, #tpu.memory_space<vmem>>, vector<64x96xf32>
    %22 = vector.extract_strided_slice %21 {offsets = [0, 0], sizes = [64, 64], strides = [1, 1]} : vector<64x96xf32> to vector<64x64xf32>
    %cst = arith.constant dense<0.000000e+00> : vector<16x96xf32>
    %23 = tpu.matmul %0, %1, %cst {dimension_numbers = #tpu.dot_dimension_numbers<[1], [0], [0], [1], [0, 0, 1, 1], [], []>} : vector<16x32xf32>, vector<32x96xf32>, vector<16x96xf32> -> vector<16x96xf32>
    %24 = vector.broadcast %9 : vector<1x96xf32> to vector<16x96xf32>
    %25 = arith.addf %23, %24 : vector<16x96xf32>
    %26 = vector.extract_strided_slice %25 {offsets = [0, 0], sizes = [16, 32], strides = [1, 1]} : vector<16x96xf32> to vector<16x32xf32>
    %27 = vector.extract_strided_slice %25 {offsets = [0, 32], sizes = [16, 32], strides = [1, 1]} : vector<16x96xf32> to vector<16x32xf32>
    %28 = vector.extract_strided_slice %25 {offsets = [0, 64], sizes = [16, 32], strides = [1, 1]} : vector<16x96xf32> to vector<16x32xf32>
    %29 = tpu.concatenate %27, %27, %27, %27 in 0 : vector<16x32xf32>, vector<16x32xf32>, vector<16x32xf32>, vector<16x32xf32> -> vector<64x32xf32>
    %30 = arith.mulf %29, %18 : vector<64x32xf32>
    %31 = tpu.concatenate %28, %28, %28, %28 in 0 : vector<16x32xf32>, vector<16x32xf32>, vector<16x32xf32>, vector<16x32xf32> -> vector<64x32xf32>
    %32 = arith.mulf %31, %18 : vector<64x32xf32>
    %cst_10 = arith.constant dense<0.000000e+00> : vector<16x64xf32>
    %33 = tpu.matmul %26, %30, %cst_10 {dimension_numbers = #tpu.dot_dimension_numbers<[1], [1], [0], [0], [0, 0, 1, 0], [], []>} : vector<16x32xf32>, vector<64x32xf32>, vector<16x64xf32> -> vector<16x64xf32>
    %34 = arith.addf %33, %20 : vector<16x64xf32>
    %cst_11 = arith.constant dense<0xFF800000> : vector<16xf32>
    %35 = vector.multi_reduction <maximumf>, %34, %cst_11 [1] : vector<16x64xf32> to vector<16xf32>
    %36 = vector.shape_cast %35 : vector<16xf32> to vector<16x1xf32>
    %37 = vector.broadcast %36 : vector<16x1xf32> to vector<16x64xf32>
    %38 = arith.subf %34, %37 : vector<16x64xf32>
    %39 = math.exp %38 : vector<16x64xf32>
    %cst_12 = arith.constant dense<0.000000e+00> : vector<16x64xf32>
    %40 = tpu.matmul %39, %22, %cst_12 {dimension_numbers = #tpu.dot_dimension_numbers<[1], [0], [0], [1], [0, 0, 1, 1], [], []>} : vector<16x64xf32>, vector<64x64xf32>, vector<16x64xf32> -> vector<16x64xf32>
    %41 = tpu.reciprocal %40 : vector<16x64xf32> -> vector<16x64xf32>
    %42 = arith.mulf %39, %41 : vector<16x64xf32>
    %cst_13 = arith.constant dense<0.000000e+00> : vector<16x32xf32>
    %43 = tpu.matmul %42, %32, %cst_13 {dimension_numbers = #tpu.dot_dimension_numbers<[1], [0], [0], [1], [0, 0, 1, 1], [], []>} : vector<16x64xf32>, vector<64x32xf32>, vector<16x32xf32> -> vector<16x32xf32>
    %cst_14 = arith.constant dense<0.000000e+00> : vector<16x32xf32>
    %44 = tpu.matmul %43, %3, %cst_14 {dimension_numbers = #tpu.dot_dimension_numbers<[1], [0], [0], [1], [0, 0, 1, 1], [], []>} : vector<16x32xf32>, vector<32x32xf32>, vector<16x32xf32> -> vector<16x32xf32>
    %45 = vector.broadcast %10 : vector<1x32xf32> to vector<16x32xf32>
    %46 = arith.addf %44, %45 : vector<16x32xf32>
    %47 = arith.addf %0, %46 : vector<16x32xf32>
    %cst_15 = arith.constant dense<0.000000e+00> : vector<16xf32>
    %48 = vector.multi_reduction <add>, %47, %cst_15 [1] : vector<16x32xf32> to vector<16xf32>
    %49 = vector.shape_cast %48 : vector<16xf32> to vector<16x1xf32>
    %cst_16 = arith.constant 3.200000e+01 : f32
    %50 = vector.broadcast %cst_16 : f32 to vector<16x1xf32>
    %51 = arith.divf %49, %50 : vector<16x1xf32>
    %52 = vector.broadcast %51 : vector<16x1xf32> to vector<16x32xf32>
    %53 = arith.subf %47, %52 : vector<16x32xf32>
    %54 = arith.mulf %53, %53 : vector<16x32xf32>
    %cst_17 = arith.constant dense<0.000000e+00> : vector<16xf32>
    %55 = vector.multi_reduction <add>, %54, %cst_17 [1] : vector<16x32xf32> to vector<16xf32>
    %56 = vector.shape_cast %55 : vector<16xf32> to vector<16x1xf32>
    %cst_18 = arith.constant 3.200000e+01 : f32
    %57 = vector.broadcast %cst_18 : f32 to vector<16x1xf32>
    %58 = arith.divf %56, %57 : vector<16x1xf32>
    %59 = vector.broadcast %51 : vector<16x1xf32> to vector<16x32xf32>
    %60 = arith.subf %47, %59 : vector<16x32xf32>
    %cst_19 = arith.constant 9.99999974E-6 : f32
    %61 = vector.broadcast %cst_19 : f32 to vector<16x1xf32>
    %62 = arith.addf %58, %61 : vector<16x1xf32>
    %63 = math.rsqrt %62 : vector<16x1xf32>
    %64 = vector.broadcast %63 : vector<16x1xf32> to vector<16x32xf32>
    %65 = arith.mulf %60, %64 : vector<16x32xf32>
    %66 = vector.broadcast %13 : vector<1x32xf32> to vector<16x32xf32>
    %67 = arith.mulf %65, %66 : vector<16x32xf32>
    %68 = vector.broadcast %14 : vector<1x32xf32> to vector<16x32xf32>
    %69 = arith.addf %67, %68 : vector<16x32xf32>
    %cst_20 = arith.constant dense<0.000000e+00> : vector<16x64xf32>
    %70 = tpu.matmul %69, %5, %cst_20 {dimension_numbers = #tpu.dot_dimension_numbers<[1], [0], [0], [1], [0, 0, 1, 1], [], []>} : vector<16x32xf32>, vector<32x64xf32>, vector<16x64xf32> -> vector<16x64xf32>
    %71 = vector.broadcast %11 : vector<1x64xf32> to vector<16x64xf32>
    %72 = arith.addf %70, %71 : vector<16x64xf32>
    %cst_21 = arith.constant 0.000000e+00 : f32
    %73 = vector.broadcast %cst_21 : f32 to vector<16x64xf32>
    %74 = arith.maximumf %72, %73 : vector<16x64xf32>
    %cst_22 = arith.constant dense<0.000000e+00> : vector<16x32xf32>
    %75 = tpu.matmul %74, %7, %cst_22 {dimension_numbers = #tpu.dot_dimension_numbers<[1], [0], [0], [1], [0, 0, 1, 1], [], []>} : vector<16x64xf32>, vector<64x32xf32>, vector<16x32xf32> -> vector<16x32xf32>
    %76 = vector.broadcast %12 : vector<1x32xf32> to vector<16x32xf32>
    %77 = arith.addf %75, %76 : vector<16x32xf32>
    %78 = arith.addf %69, %77 : vector<16x32xf32>
    %cst_23 = arith.constant dense<0.000000e+00> : vector<16xf32>
    %79 = vector.multi_reduction <add>, %78, %cst_23 [1] : vector<16x32xf32> to vector<16xf32>
    %80 = vector.shape_cast %79 : vector<16xf32> to vector<16x1xf32>
    %cst_24 = arith.constant 3.200000e+01 : f32
    %81 = vector.broadcast %cst_24 : f32 to vector<16x1xf32>
    %82 = arith.divf %80, %81 : vector<16x1xf32>
    %83 = vector.broadcast %82 : vector<16x1xf32> to vector<16x32xf32>
    %84 = arith.subf %78, %83 : vector<16x32xf32>
    %85 = arith.mulf %84, %84 : vector<16x32xf32>
    %cst_25 = arith.constant dense<0.000000e+00> : vector<16xf32>
    %86 = vector.multi_reduction <add>, %85, %cst_25 [1] : vector<16x32xf32> to vector<16xf32>
    %87 = vector.shape_cast %86 : vector<16xf32> to vector<16x1xf32>
    %cst_26 = arith.constant 3.200000e+01 : f32
    %88 = vector.broadcast %cst_26 : f32 to vector<16x1xf32>
    %89 = arith.divf %87, %88 : vector<16x1xf32>
    %90 = vector.broadcast %82 : vector<16x1xf32> to vector<16x32xf32>
    %91 = arith.subf %78, %90 : vector<16x32xf32>
    %cst_27 = arith.constant 9.99999974E-6 : f32
    %92 = vector.broadcast %cst_27 : f32 to vector<16x1xf32>
    %93 = arith.addf %89, %92 : vector<16x1xf32>
    %94 = math.rsqrt %93 : vector<16x1xf32>
    %95 = vector.broadcast %94 : vector<16x1xf32> to vector<16x32xf32>
    %96 = arith.mulf %91, %95 : vector<16x32xf32>
    %97 = vector.broadcast %15 : vector<1x32xf32> to vector<16x32xf32>
    %98 = arith.mulf %96, %97 : vector<16x32xf32>
    %99 = vector.broadcast %16 : vector<1x32xf32> to vector<16x32xf32>
    %100 = arith.addf %98, %99 : vector<16x32xf32>
    %c0_28 = arith.constant 0 : index
    %c0_29 = arith.constant 0 : index
    %101 = vector.load %arg2[%c0_28, %c0_29] : memref<16x32xf32, #tpu.memory_space<vmem>>, vector<16x32xf32>
    tpu.vector_store %arg2[%c0_28, %c0_29], %100 {strides = array<i32>} : memref<16x32xf32, #tpu.memory_space<vmem>>, vector<16x32xf32>,
    return
  }
}

</mosaic_0001>

<llo_original>
// kernel: transformer_encoder_layer.1
$region0: #{transformer_encoder_layer.1}
  #allocation0 [shape = 'u32[]', space=smem, size = 0x4, offset = 0x4, fixed_abs, tag = 'smem constant byte address 0x4 - core index']
  #allocation1 [shape = 'u32[72,128]{1,0:T(1,128)}', space=vmem, size = 0x9000, scoped, tag = 'internal scratch']
  %s0 = inlined_call_operand.vmem [shape: f32[16,32], index: 0, kind: input, shape index: {}]
  %s1 = inlined_call_operand.vmem [shape: f32[312,96], index: 1, kind: input, shape index: {}]
  %s2 = inlined_call_operand.hbm [shape: f32[16,32], index: 2, kind: output, shape index: {}]
  %s3 = sld [smem:[#allocation0]]
  $region18: #{transformer_encoder_layer.1} parent=0
    _
  %s5 = ssub.s32 1, %s3
  %s6 = scalar_select 0, %s5, %s3
  $region1: #{transformer_encoder_layer.1} parent=0
    #allocation2 [shape = 'u8[8192]{0}', space=vmem, size = 0x2000, scoped, tag = 'output window, operand 0, single buffered']
    #allocation3 [shape = 's32[1]{0}', space=sflag, size = 0x4, scoped, tag = 'scoped memory for transformer_encoder_layer.1']
    %7 = vsyncpa [#allocation3], 0
    // Predicated region
    $region2: #{transformer_encoder_layer.1} parent=1 // pred_check
      _
    $region3: #{transformer_encoder_layer.1} parent=1 // pred_check_branch
      %9 = sbr.rel (0) target = $region5
    $region4: #{transformer_encoder_layer.1} parent=1 // pred_region
      _
    $region5: #{transformer_encoder_layer.1} parent=1 // pred_fallthru
      _
    // Predicated region
    $region6: #{transformer_encoder_layer.1} parent=1 // pred_check
      _
    $region7: #{transformer_encoder_layer.1} parent=1 // pred_check_branch
      %11 = sbr.rel (0) target = $region9
    $region8: #{transformer_encoder_layer.1} parent=1 // pred_region
      _
    $region9: #{transformer_encoder_layer.1} parent=1 // pred_fallthru
      _
    %v12 = vld [vmem:[%s0] sm:$0xff]
    %v13 = vld [vmem:[%s0 + $0x8] sm:$0xff]
    %v14 = vld [vmem:[%s1] sm:$0xff]
    %v15 = vld [vmem:[%s1 + $0x8] sm:$0xff]
    %v16 = vld [vmem:[%s1 + $0x10] sm:$0xff]
    %v17 = vld [vmem:[%s1 + $0x18] sm:$0xff]
    %v18 = vld [vmem:[%s1 + $0x20] sm:$0xff]
    %v19 = vld [vmem:[%s1 + $0x28] sm:$0xff]
    %v20 = vld [vmem:[%s1 + $0x30] sm:$0xff]
    %v21 = vld [vmem:[%s1 + $0x38] sm:$0xff]
    %v22 = vld [vmem:[%s1 + $0x40] sm:$0xff]
    %v23 = vld [vmem:[%s1 + $0x48] sm:$0xff]
    %v24 = vld [vmem:[%s1 + $0x50] sm:$0xff]
    %v25 = vld [vmem:[%s1 + $0x58] sm:$0xff]
    %v26 = vld [vmem:[%s1 + $0x60] sm:$0xff]
    %v27 = vld [vmem:[%s1 + $0x68] sm:$0xff]
    %v28 = vld [vmem:[%s1 + $0x70] sm:$0xff]
    %v29 = vld [vmem:[%s1 + $0x78] sm:$0xff]
    %v30 = vld [vmem:[%s1 + $0x80] sm:$0xff]
    %v31 = vld [vmem:[%s1 + $0x88] sm:$0xff]
    %v32 = vld [vmem:[%s1 + $0x90] sm:$0xff]
    %v33 = vld [vmem:[%s1 + $0x98] sm:$0xff]
    %v34 = vld [vmem:[%s1 + $0xa0] sm:$0xff]
    %v35 = vld [vmem:[%s1 + $0xa8] sm:$0xff]
    %v36 = vld [vmem:[%s1 + $0xb0] sm:$0xff]
    %v37 = vld [vmem:[%s1 + $0xb8] sm:$0xff]
    %v38 = vld [vmem:[%s1 + $0xc0] sm:$0xff]
    %v39 = vld [vmem:[%s1 + $0xc8] sm:$0xff]
    %v40 = vld [vmem:[%s1 + $0xd0] sm:$0xff]
    %v41 = vld [vmem:[%s1 + $0xd8] sm:$0xff]
    %v42 = vld [vmem:[%s1 + $0xe0] sm:$0xff]
    %v43 = vld [vmem:[%s1 + $0xe8] sm:$0xff]
    %v44 = vld [vmem:[%s1 + $0xf0] sm:$0xff]
    %v45 = vld [vmem:[%s1 + $0xf8] sm:$0xff]
    %v46 = vld [vmem:[%s1 + $0x100] sm:$0xff]
    %v47 = vld [vmem:[%s1 + $0x108] sm:$0xff]
    %v48 = vld [vmem:[%s1 + $0x110] sm:$0xff]
    %v49 = vld [vmem:[%s1 + $0x118] sm:$0xff]
    %v50 = vld [vmem:[%s1 + $0x120] sm:$0xff]
    %v51 = vld [vmem:[%s1 + $0x128] sm:$0xff]
    %v52 = vld [vmem:[%s1 + $0x130] sm:$0xff]
    %v53 = vperm.slane %v34, 0
    %vm54 = vcmask 261120
    %v56 = vsel %vm54, %v12, 0
    %v59 = vsel %vm54, %v13, 0
    %61 = vmatpush.msra.mxu0 0.0
    %62 = vmatpush.msra.mxu0 0.0
    %63 = vmatpush.msra.mxu0 0.0
    %64 = vmatpush.msra.mxu0 0.0
    %65 = vmatpush.msra.mxu0 0.0
    %66 = vmatpush.msra.mxu0 0.0
    %67 = vmatpush.msra.mxu0 0.0
    %68 = vmatpush.msra.mxu0 0.0
    %69 = vmatpush.msra.mxu0 0.0
    %70 = vmatpush.msra.mxu0 0.0
    %71 = vmatpush.msra.mxu0 0.0
    %72 = vmatpush.msra.mxu0 0.0
    %73 = vmatpush.msra.mxu0 %v17
    %74 = vmatpush.msra.mxu0 %v16
    %75 = vmatpush.msra.mxu0 %v15
    %76 = vmatpush.msra.mxu0 %v14
    %77 = vmatmul.f32.gmra.mxu0 %v56
    %v78 = vpop.f32.mrf.mxu0
    %v79 = vadd.f32 %v53, %v78
    %80 = vmatmul.f32.gmra.mxu0 %v59
    %v81 = vpop.f32.mrf.mxu0
    %v82 = vadd.f32 %v53, %v81
    %83 = vdwg.mxu0
    %92 = vrot.lane.b32.xlu0 %v35, 32
    %v93 = vpop.permute.xlu0 %92
    %94 = vrot.lane.b32.xlu0 %v36, 32
    %v95 = vpop.permute.xlu0 %94
    %96 = vrot.lane.b32.xlu0 %v37, 32
    %v97 = vpop.permute.xlu0 %96
    %98 = vrot.lane.b32.xlu0 %v38, 32
    %v99 = vpop.permute.xlu0 %98
    %100 = vrot.lane.b32.xlu0 %v39, 32
    %v101 = vpop.permute.xlu0 %100
    %102 = vrot.lane.b32.xlu0 %v40, 32
    %v103 = vpop.permute.xlu0 %102
    %104 = vrot.lane.b32.xlu0 %v41, 32
    %v105 = vpop.permute.xlu0 %104
    %106 = vrot.lane.b32.xlu0 %v42, 32
    %v107 = vpop.permute.xlu0 %106
    %v116 = vmul.f32 %v79, %v93
    %v117 = vmul.f32 %v82, %v95
    %v118 = vmul.f32 %v79, %v97
    %v119 = vmul.f32 %v82, %v99
    %v120 = vmul.f32 %v79, %v101
    %v121 = vmul.f32 %v82, %v103
    %v122 = vmul.f32 %v79, %v105
    %v123 = vmul.f32 %v82, %v107
    %124 = vrot.lane.b32.xlu0 %v35, 64
    %v125 = vpop.permute.xlu0 %124
    %126 = vrot.lane.b32.xlu0 %v36, 64
    %v127 = vpop.permute.xlu0 %126
    %128 = vrot.lane.b32.xlu0 %v37, 64
    %v129 = vpop.permute.xlu0 %128
    %130 = vrot.lane.b32.xlu0 %v38, 64
    %v131 = vpop.permute.xlu0 %130
    %132 = vrot.lane.b32.xlu0 %v39, 64
    %v133 = vpop.permute.xlu0 %132
    %134 = vrot.lane.b32.xlu0 %v40, 64
    %v135 = vpop.permute.xlu0 %134
    %136 = vrot.lane.b32.xlu0 %v41, 64
    %v137 = vpop.permute.xlu0 %136
    %138 = vrot.lane.b32.xlu0 %v42, 64
    %v139 = vpop.permute.xlu0 %138
    %v148 = vmul.f32 %v79, %v125
    %v149 = vmul.f32 %v82, %v127
    %v150 = vmul.f32 %v79, %v129
    %v151 = vmul.f32 %v82, %v131
    %v152 = vmul.f32 %v79, %v133
    %v153 = vmul.f32 %v82, %v135
    %v154 = vmul.f32 %v79, %v137
    %v155 = vmul.f32 %v82, %v139
    %164 = vrot.lane.b32.xlu0 %v116, 96
    %v165 = vpop.permute.xlu0 %164
    %166 = vrot.lane.b32.xlu0 %v117, 96
    %v167 = vpop.permute.xlu0 %166
    %168 = vrot.lane.b32.xlu0 %v118, 96
    %v169 = vpop.permute.xlu0 %168
    %170 = vrot.lane.b32.xlu0 %v119, 96
    %v171 = vpop.permute.xlu0 %170
    %172 = vrot.lane.b32.xlu0 %v120, 96
    %v173 = vpop.permute.xlu0 %172
    %174 = vrot.lane.b32.xlu0 %v121, 96
    %v175 = vpop.permute.xlu0 %174
    %176 = vrot.lane.b32.xlu0 %v122, 96
    %v177 = vpop.permute.xlu0 %176
    %178 = vrot.lane.b32.xlu0 %v123, 96
    %v179 = vpop.permute.xlu0 %178
    %v181 = vsel %vm54, %v79, 0
    %v184 = vsel %vm54, %v82, 0
    %v186 = vsel %vm54, %v165, 0
    %v188 = vsel %vm54, %v167, 0
    %v190 = vsel %vm54, %v169, 0
    %v192 = vsel %vm54, %v171, 0
    %v194 = vsel %vm54, %v173, 0
    %v196 = vsel %vm54, %v175, 0
    %v198 = vsel %vm54, %v177, 0
    %v200 = vsel %vm54, %v179, 0
    %202 = vmatpush.xpose.msra.mxu0 0.0
    %203 = vmatpush.xpose.msra.mxu0 0.0
    %204 = vmatpush.xpose.msra.mxu0 0.0
    %205 = vmatpush.xpose.msra.mxu0 0.0
    %206 = vmatpush.xpose.msra.mxu0 0.0
    %207 = vmatpush.xpose.msra.mxu0 0.0
    %208 = vmatpush.xpose.msra.mxu0 0.0
    %209 = vmatpush.xpose.msra.mxu0 0.0
    %210 = vmatpush.xpose.msra.mxu0 %v200
    %211 = vmatpush.xpose.msra.mxu0 %v198
    %212 = vmatpush.xpose.msra.mxu0 %v196
    %213 = vmatpush.xpose.msra.mxu0 %v194
    %214 = vmatpush.xpose.msra.mxu0 %v192
    %215 = vmatpush.xpose.msra.mxu0 %v190
    %216 = vmatpush.xpose.msra.mxu0 %v188
    %217 = vmatpush.xpose.msra.mxu0 %v186
    %218 = vmatmul.f32.gmra.mxu0 %v181
    %v219 = vpop.f32.mrf.mxu0
    %v220 = vadd.f32 %v43, %v219
    %221 = vmatmul.f32.gmra.mxu0 %v184
    %v222 = vpop.f32.mrf.mxu0
    %v223 = vadd.f32 %v44, %v222
    %224 = vdwg.mxu0
    %vm225 = vcmask 523264
    %v226 = vsel %vm225, %v220, -inf
    %227 = vmax.xlane.f32.xlu0 %v226
    %v228 = vpop.xlane.xlu0 %227
    %v229 = vsel %vm225, %v223, -inf
    %230 = vmax.xlane.f32.xlu0 %v229
    %v231 = vpop.xlane.xlu0 %230
    %v232 = vsub.f32 %v220, %v228
    %v233 = vsub.f32 %v223, %v231
    %v234 = vmul.f32 %v232, 1.442695
    %v235 = vpow.pop %v234
    %v236 = vmul.f32 %v233, 1.442695
    %v237 = vpow.pop %v236
    %v239 = vsel %vm225, %v235, 0
    %v242 = vsel %vm225, %v237, 0
    %244 = vmatpush.msra.mxu0 0.0
    %245 = vmatpush.msra.mxu0 0.0
    %246 = vmatpush.msra.mxu0 0.0
    %247 = vmatpush.msra.mxu0 0.0
    %248 = vmatpush.msra.mxu0 0.0
    %249 = vmatpush.msra.mxu0 0.0
    %250 = vmatpush.msra.mxu0 0.0
    %251 = vmatpush.msra.mxu0 0.0
    %252 = vmatpush.msra.mxu0 %v52
    %253 = vmatpush.msra.mxu0 %v51
    %254 = vmatpush.msra.mxu0 %v50
    %255 = vmatpush.msra.mxu0 %v49
    %256 = vmatpush.msra.mxu0 %v48
    %257 = vmatpush.msra.mxu0 %v47
    %258 = vmatpush.msra.mxu0 %v46
    %259 = vmatpush.msra.mxu0 %v45
    %260 = vmatmul.f32.gmra.mxu0 %v239
    %v261 = vpop.f32.mrf.mxu0
    %v262 = vadd.f32 0.0, %v261
    %263 = vmatmul.f32.gmra.mxu0 %v242
    %v264 = vpop.f32.mrf.mxu0
    %v265 = vadd.f32 0.0, %v264
    %266 = vdwg.mxu0
    %v267 = vrcp.pop %v262
    %v268 = vmul.f32 %v262, %v267
    %v269 = vsub.f32 1.0, %v268
    %v270 = vmul.f32 %v267, %v269
    %v271 = vadd.f32 %v267, %v270
    %vm272 = vweird.f32 %v262
    %vm273 = vweird.f32 %v267
    %vm274 = vmor %vm272, %vm273
    %v275 = vsel %vm274, %v267, %v271
    %v276 = vand.u32 2147483647, %v262
    %vm277 = vcmp.eq.f32.partialorder %v276, 8.507059e+37
    %v278 = vand.u32 %v262, 2147483648
    %v279 = vor.u32 1.1754944e-38, %v278
    %v280 = vsel %vm277, %v279, %v275
    %v281 = vrcp.pop %v265
    %v282 = vmul.f32 %v265, %v281
    %v283 = vsub.f32 1.0, %v282
    %v284 = vmul.f32 %v281, %v283
    %v285 = vadd.f32 %v281, %v284
    %vm286 = vweird.f32 %v265
    %vm287 = vweird.f32 %v281
    %vm288 = vmor %vm286, %vm287
    %v289 = vsel %vm288, %v281, %v285
    %v290 = vand.u32 2147483647, %v265
    %vm291 = vcmp.eq.f32.partialorder %v290, 8.507059e+37
    %v292 = vand.u32 %v265, 2147483648
    %v293 = vor.u32 1.1754944e-38, %v292
    %v294 = vsel %vm291, %v293, %v289
    %v295 = vmul.f32 %v235, %v280
    %v296 = vmul.f32 %v237, %v294
    %305 = vrot.lane.b32.xlu0 %v148, 64
    %v306 = vpop.permute.xlu0 %305
    %307 = vrot.lane.b32.xlu0 %v149, 64
    %v308 = vpop.permute.xlu0 %307
    %309 = vrot.lane.b32.xlu0 %v150, 64
    %v310 = vpop.permute.xlu0 %309
    %311 = vrot.lane.b32.xlu0 %v151, 64
    %v312 = vpop.permute.xlu0 %311
    %313 = vrot.lane.b32.xlu0 %v152, 64
    %v314 = vpop.permute.xlu0 %313
    %315 = vrot.lane.b32.xlu0 %v153, 64
    %v316 = vpop.permute.xlu0 %315
    %317 = vrot.lane.b32.xlu0 %v154, 64
    %v318 = vpop.permute.xlu0 %317
    %319 = vrot.lane.b32.xlu0 %v155, 64
    %v320 = vpop.permute.xlu0 %319
    %v330 = vsel %vm225, %v295, 0
    %v333 = vsel %vm225, %v296, 0
    %335 = vmatpush.msra.mxu0 0.0
    %336 = vmatpush.msra.mxu0 0.0
    %337 = vmatpush.msra.mxu0 0.0
    %338 = vmatpush.msra.mxu0 0.0
    %339 = vmatpush.msra.mxu0 0.0
    %340 = vmatpush.msra.mxu0 0.0
    %341 = vmatpush.msra.mxu0 0.0
    %342 = vmatpush.msra.mxu0 0.0
    %343 = vmatpush.msra.mxu0 %v320
    %344 = vmatpush.msra.mxu0 %v318
    %345 = vmatpush.msra.mxu0 %v316
    %346 = vmatpush.msra.mxu0 %v314
    %347 = vmatpush.msra.mxu0 %v312
    %348 = vmatpush.msra.mxu0 %v310
    %349 = vmatpush.msra.mxu0 %v308
    %350 = vmatpush.msra.mxu0 %v306
    %351 = vmatmul.f32.gmra.mxu0 %v330
    %v352 = vpop.f32.mrf.mxu0
    %v353 = vadd.f32 0.0, %v352
    %354 = vmatmul.f32.gmra.mxu0 %v333
    %v355 = vpop.f32.mrf.mxu0
    %v356 = vadd.f32 0.0, %v355
    %357 = vdwg.mxu0
    %v358 = vperm.slane %v34, 1
    %v360 = vsel %vm54, %v353, 0
    %v363 = vsel %vm54, %v356, 0
    %365 = vmatpush.msra.mxu0 0.0
    %366 = vmatpush.msra.mxu0 0.0
    %367 = vmatpush.msra.mxu0 0.0
    %368 = vmatpush.msra.mxu0 0.0
    %369 = vmatpush.msra.mxu0 0.0
    %370 = vmatpush.msra.mxu0 0.0
    %371 = vmatpush.msra.mxu0 0.0
    %372 = vmatpush.msra.mxu0 0.0
    %373 = vmatpush.msra.mxu0 0.0
    %374 = vmatpush.msra.mxu0 0.0
    %375 = vmatpush.msra.mxu0 0.0
    %376 = vmatpush.msra.mxu0 0.0
    %377 = vmatpush.msra.mxu0 %v21
    %378 = vmatpush.msra.mxu0 %v20
    %379 = vmatpush.msra.mxu0 %v19
    %380 = vmatpush.msra.mxu0 %v18
    %381 = vmatmul.f32.gmra.mxu0 %v360
    %v382 = vpop.f32.mrf.mxu0
    %v383 = vadd.f32 %v358, %v382
    %384 = vmatmul.f32.gmra.mxu0 %v363
    %v385 = vpop.f32.mrf.mxu0
    %v386 = vadd.f32 %v358, %v385
    %387 = vdwg.mxu0
    %v388 = vadd.f32 %v12, %v383
    %v389 = vadd.f32 %v13, %v386
    %v390 = vsel %vm54, %v388, 0.0
    %391 = vadd.xlane.f32.xlu0 %v390
    %v392 = vpop.xlane.xlu0 %391
    %v393 = vsel %vm54, %v389, 0.0
    %394 = vadd.xlane.f32.xlu0 %v393
    %v395 = vpop.xlane.xlu0 %394
    %v396 = vrcp.pop 32.0
    %v397 = vmul.f32 32.0, %v396
    %v398 = vsub.f32 1.0, %v397
    %v399 = vmul.f32 %v396, %v398
    %v400 = vadd.f32 %v396, %v399
    %vm401 = vweird.f32 %v396
    %v402 = vsel %vm401, %v396, %v400
    %v403 = vmul.f32 %v392, %v402
    %v404 = vmul.f32 %v395, %v402
    %v405 = vsub.f32 %v388, %v403
    %v406 = vsub.f32 %v389, %v404
    %v407 = vmul.f32 %v405, %v405
    %v408 = vmul.f32 %v406, %v406
    %v409 = vsel %vm54, %v407, 0.0
    %410 = vadd.xlane.f32.xlu0 %v409
    %v411 = vpop.xlane.xlu0 %410
    %v412 = vsel %vm54, %v408, 0.0
    %413 = vadd.xlane.f32.xlu0 %v412
    %v414 = vpop.xlane.xlu0 %413
    %v415 = vmul.f32 %v411, %v402
    %v416 = vmul.f32 %v414, %v402
    %v417 = vadd.f32 %v415, 1e-05
    %v418 = vadd.f32 %v416, 1e-05
    %v419 = vrsqrt.pop %v417
    %v420 = vmul.f32 %v419, %v417
    %v421 = vmul.f32 %v420, %v419
    %v422 = vmul.f32 0.5, %v421
    %v423 = vsub.f32 1.5, %v422
    %v424 = vmul.f32 %v419, %v423
    %vm425 = vweird.f32 %v417
    %vm426 = vweird.f32 %v419
    %vm427 = vmor %vm425, %vm426
    %v428 = vsel %vm427, %v419, %v424
    %v429 = vrsqrt.pop %v418
    %v430 = vmul.f32 %v429, %v418
    %v431 = vmul.f32 %v430, %v429
    %v432 = vmul.f32 0.5, %v431
    %v433 = vsub.f32 1.5, %v432
    %v434 = vmul.f32 %v429, %v433
    %vm435 = vweird.f32 %v418
    %vm436 = vweird.f32 %v429
    %vm437 = vmor %vm435, %vm436
    %v438 = vsel %vm437, %v429, %v434
    %v439 = vmul.f32 %v405, %v428
    %v440 = vmul.f32 %v406, %v438
    %v441 = vperm.slane %v34, 4
    %v442 = vmul.f32 %v439, %v441
    %v443 = vmul.f32 %v440, %v441
    %v444 = vperm.slane %v34, 5
    %v445 = vadd.f32 %v442, %v444
    %v446 = vadd.f32 %v443, %v444
    %v447 = vperm.slane %v34, 2
    %v449 = vsel %vm54, %v445, 0
    %v452 = vsel %vm54, %v446, 0
    %454 = vmatpush.msra.mxu0 0.0
    %455 = vmatpush.msra.mxu0 0.0
    %456 = vmatpush.msra.mxu0 0.0
    %457 = vmatpush.msra.mxu0 0.0
    %458 = vmatpush.msra.mxu0 0.0
    %459 = vmatpush.msra.mxu0 0.0
    %460 = vmatpush.msra.mxu0 0.0
    %461 = vmatpush.msra.mxu0 0.0
    %462 = vmatpush.msra.mxu0 0.0
    %463 = vmatpush.msra.mxu0 0.0
    %464 = vmatpush.msra.mxu0 0.0
    %465 = vmatpush.msra.mxu0 0.0
    %466 = vmatpush.msra.mxu0 %v25
    %467 = vmatpush.msra.mxu0 %v24
    %468 = vmatpush.msra.mxu0 %v23
    %469 = vmatpush.msra.mxu0 %v22
    %470 = vmatmul.f32.gmra.mxu0 %v449
    %v471 = vpop.f32.mrf.mxu0
    %v472 = vadd.f32 %v447, %v471
    %473 = vmatmul.f32.gmra.mxu0 %v452
    %v474 = vpop.f32.mrf.mxu0
    %v475 = vadd.f32 %v447, %v474
    %476 = vdwg.mxu0
    %v477 = vmax.f32 %v472, 0.0
    %v478 = vmax.f32 %v475, 0.0
    %v479 = vperm.slane %v34, 3
    %v481 = vsel %vm225, %v477, 0
    %v484 = vsel %vm225, %v478, 0
    %486 = vmatpush.msra.mxu0 0.0
    %487 = vmatpush.msra.mxu0 0.0
    %488 = vmatpush.msra.mxu0 0.0
    %489 = vmatpush.msra.mxu0 0.0
    %490 = vmatpush.msra.mxu0 0.0
    %491 = vmatpush.msra.mxu0 0.0
    %492 = vmatpush.msra.mxu0 0.0
    %493 = vmatpush.msra.mxu0 0.0
    %494 = vmatpush.msra.mxu0 %v33
    %495 = vmatpush.msra.mxu0 %v32
    %496 = vmatpush.msra.mxu0 %v31
    %497 = vmatpush.msra.mxu0 %v30
    %498 = vmatpush.msra.mxu0 %v29
    %499 = vmatpush.msra.mxu0 %v28
    %500 = vmatpush.msra.mxu0 %v27
    %501 = vmatpush.msra.mxu0 %v26
    %502 = vmatmul.f32.gmra.mxu0 %v481
    %v503 = vpop.f32.mrf.mxu0
    %v504 = vadd.f32 %v479, %v503
    %505 = vmatmul.f32.gmra.mxu0 %v484
    %v506 = vpop.f32.mrf.mxu0
    %v507 = vadd.f32 %v479, %v506
    %508 = vdwg.mxu0
    %v509 = vadd.f32 %v445, %v504
    %v510 = vadd.f32 %v446, %v507
    %v511 = vsel %vm54, %v509, 0.0
    %512 = vadd.xlane.f32.xlu0 %v511
    %v513 = vpop.xlane.xlu0 %512
    %v514 = vsel %vm54, %v510, 0.0
    %515 = vadd.xlane.f32.xlu0 %v514
    %v516 = vpop.xlane.xlu0 %515
    %v517 = vmul.f32 %v513, %v402
    %v518 = vmul.f32 %v516, %v402
    %v519 = vsub.f32 %v509, %v517
    %v520 = vsub.f32 %v510, %v518
    %v521 = vmul.f32 %v519, %v519
    %v522 = vmul.f32 %v520, %v520
    %v523 = vsel %vm54, %v521, 0.0
    %524 = vadd.xlane.f32.xlu0 %v523
    %v525 = vpop.xlane.xlu0 %524
    %v526 = vsel %vm54, %v522, 0.0
    %527 = vadd.xlane.f32.xlu0 %v526
    %v528 = vpop.xlane.xlu0 %527
    %v529 = vmul.f32 %v525, %v402
    %v530 = vmul.f32 %v528, %v402
    %v531 = vadd.f32 %v529, 1e-05
    %v532 = vadd.f32 %v530, 1e-05
    %v533 = vrsqrt.pop %v531
    %v534 = vmul.f32 %v533, %v531
    %v535 = vmul.f32 %v534, %v533
    %v536 = vmul.f32 0.5, %v535
    %v537 = vsub.f32 1.5, %v536
    %v538 = vmul.f32 %v533, %v537
    %vm539 = vweird.f32 %v531
    %vm540 = vweird.f32 %v533
    %vm541 = vmor %vm539, %vm540
    %v542 = vsel %vm541, %v533, %v538
    %v543 = vrsqrt.pop %v532
    %v544 = vmul.f32 %v543, %v532
    %v545 = vmul.f32 %v544, %v543
    %v546 = vmul.f32 0.5, %v545
    %v547 = vsub.f32 1.5, %v546
    %v548 = vmul.f32 %v543, %v547
    %vm549 = vweird.f32 %v532
    %vm550 = vweird.f32 %v543
    %vm551 = vmor %vm549, %vm550
    %v552 = vsel %vm551, %v543, %v548
    %v553 = vmul.f32 %v519, %v542
    %v554 = vmul.f32 %v520, %v552
    %v555 = vperm.slane %v34, 6
    %v556 = vmul.f32 %v553, %v555
    %v557 = vmul.f32 %v554, %v555
    %v558 = vperm.slane %v34, 7
    %v559 = vadd.f32 %v556, %v558
    %v560 = vadd.f32 %v557, %v558
    %561 = vst.msk [vmem:[#allocation2] sm:$0xff] %vm54, %v559
    %562 = vst.msk [vmem:[#allocation2 + $0x8] sm:$0xff] %vm54, %v560
    // Predicated region
    $region10: #{transformer_encoder_layer.1} parent=1 // pred_check
      _
    $region11: #{transformer_encoder_layer.1} parent=1 // pred_check_branch
      %564 = sbr.rel (0) target = $region13
    $region12: #{transformer_encoder_layer.1} parent=1 // pred_region
      %566 = vsyncadd [#allocation3], 0
      %s567 = sshll.u32 [#allocation2], 4
      %s568 = int_to_ptr.vmem [resolvable:$true] %s567
      %s569 = sshll.u32 %s2, 4
      %s570 = int_to_ptr.hbm [resolvable:$true] %s569
      %575 = dma.vmem_to_hbm [thread:$0]  %s568, 256, %s570, [#allocation3], 128, 128, 8
    $region13: #{transformer_encoder_layer.1} parent=1 // pred_fallthru
      _
    // Predicated region
    $region14: #{transformer_encoder_layer.1} parent=1 // pred_check
      _
    $region15: #{transformer_encoder_layer.1} parent=1 // pred_check_branch
      %577 = sbr.rel (0) target = $region17
    $region16: #{transformer_encoder_layer.1} parent=1 // pred_region
      %579 = dma.done [#allocation3], 256
    $region17: #{transformer_encoder_layer.1} parent=1 // pred_fallthru
      _
    %580 = vsyncpa [#allocation3], 1

</llo_original>
